<compile_context>
chip_gen: v6e
topology: v6e:2x2x1
jax: 0.10.0
libtpu: 0.0.40
codegen_flags: <defaults>
</compile_context>

<pallas_src>
import functools
import inspect
import math

import jax
import jax.numpy as jnp
from jax.experimental import pallas as pl
from jax.experimental.pallas import tpu as pltpu

_LANE = 128      # lane width (last dim)
_SUBLANE = 8     # sublane width (second-to-last dim)


def _round_up(x, m):
    return ((x + m - 1) // m) * m


def _supports_single_buffered_specs():
    """Trace-time capability check for pipeline_mode / pl.Buffered."""
    if not hasattr(pl, "Buffered"):
        return False
    try:
        return "pipeline_mode" in inspect.signature(pl.BlockSpec).parameters
    except (TypeError, ValueError):
        return False


_SINGLE_BUFFER_WEIGHTS = _supports_single_buffered_specs()


@functools.lru_cache(maxsize=1)
def _hw_policy():
    """Per-generation tiling / VMEM policy (vmem cap, TC count, max row tile)."""
    kind = ""
    try:
        kind = jax.devices()[0].device_kind.lower()
    except Exception:  # no devices visible at trace time; use the safe default
        pass
    if "v7" in kind or "7x" in kind:
        # 64 MiB physical VMEM per TC, 2 TensorCores per chip.
        return {"vmem_cap": 52 << 20, "num_cores": 2, "max_row_tile": 512}
    if "v4" in kind or "v5p" in kind:
        # 128 MiB VMEM, megacore (2 TCs).
        return {"vmem_cap": 100 << 20, "num_cores": 2, "max_row_tile": 1024}
    # v5e / v6e: 128 MiB VMEM, single TensorCore.
    return {"vmem_cap": 100 << 20, "num_cores": 1, "max_row_tile": 1024}


def _mlp_kernel(num_layers, compute_dtype, *refs):
    """Fused MLP kernel.

    refs = (x_ref, w1, b1, w2, b2, ..., wL, bL, o_ref)
    Weights are bf16 MXU operands; the activation is cast to bf16 in-kernel,
    accumulation / bias / ReLU stay in f32.
    """
    x_ref = refs[0]
    o_ref = refs[-1]
    param_refs = refs[1:-1]

    h = x_ref[...].astype(compute_dtype)             # (row_tile, pad_in), bf16 operand
    for i in range(num_layers):
        w_ref = param_refs[2 * i]
        b_ref = param_refs[2 * i + 1]
        acc = jnp.dot(h, w_ref[...], preferred_element_type=jnp.float32)
        acc = acc + b_ref[...]                       # f32 bias add (broadcast over rows)
        if i < num_layers - 1:
            acc = jnp.maximum(acc, 0.0)              # ReLU in f32
            h = acc.astype(compute_dtype)            # bf16 operand for the next MXU pass
        else:
            h = acc
    o_ref[...] = h.astype(o_ref.dtype)


def prepare_mlp_params(weights, biases, compute_dtype=jnp.bfloat16):
    """Pad feature dims to the 128-lane width and cast ONCE (call at init time).

    weights[i] : (in_i, out_i)   (already transposed vs. PyTorch (out,in) layout)
    biases[i]  : (1, out_i) or (out_i,)
    Returns (w_padded, b_padded, out_dim).
    """
    w_p, b_p = [], []
    out_dim = None
    for w, b in zip(weights, biases):
        n_in, n_out = w.shape
        pi, po = _round_up(n_in, _LANE), _round_up(n_out, _LANE)
        wp = jnp.zeros((pi, po), compute_dtype).at[:n_in, :n_out].set(
            w.astype(compute_dtype))
        b2 = jnp.asarray(b).reshape(1, -1).astype(jnp.float32)
        bp = jnp.zeros((1, po), jnp.float32).at[:, :n_out].set(b2)
        w_p.append(wp)
        b_p.append(bp)
        out_dim = n_out
    return tuple(w_p), tuple(b_p), out_dim


def mlp_pallas_prepared(x, w_p, b_p, out_dim, *, row_tile=None,
                        compute_dtype=jnp.bfloat16, out_dtype=None):
    """Run the fused MLP on x of shape (N, input_dim) with pre-padded params."""
    num_layers = len(w_p)
    n_rows, in_dim = x.shape
    pad_in0 = w_p[0].shape[0]
    pad_out_last = w_p[-1].shape[1]
    out_dtype = x.dtype if out_dtype is None else out_dtype
    policy = _hw_policy()

    # ---- activations: pad rows only to the sublane multiple, never a full tile ----
    padded_rows = _round_up(max(n_rows, 1), _SUBLANE)
    if in_dim == pad_in0 and padded_rows == n_rows:
        x_in = x                                     # zero-copy: cast happens in-kernel
    else:
        # One padding copy; cast to bf16 here so the kernel-side DMA is halved.
        x_in = jnp.zeros((padded_rows, pad_in0), compute_dtype)
        x_in = x_in.at[:n_rows, :in_dim].set(x.astype(compute_dtype))

    # ---- row tile: big enough to amortize step overhead, >=2 steps on 2-core chips -
    if row_tile is None:
        per_core = pl.cdiv(max(n_rows, 1), policy["num_cores"])
        row_tile = min(policy["max_row_tile"],
                       _round_up(max(per_core, _SUBLANE), _SUBLANE))
    row_tile = max(_SUBLANE, _round_up(row_tile, _SUBLANE))
    row_tile = min(row_tile, padded_rows)
    grid = (pl.cdiv(padded_rows, row_tile),)

    # ---- tight VMEM budget (+25% headroom), capped per chip generation -----------
    x_bpe = jnp.dtype(x_in.dtype).itemsize
    c_bpe = jnp.dtype(compute_dtype).itemsize
    o_bpe = jnp.dtype(out_dtype).itemsize
    w_copies = 1 if _SINGLE_BUFFER_WEIGHTS else 2
    act_bytes = 2 * row_tile * pad_in0 * x_bpe                      # double-buffered x
    out_bytes = 2 * row_tile * pad_out_last * o_bpe                 # double-buffered out
    w_bytes = w_copies * (sum(w.size * c_bpe for w in w_p)
                          + sum(b.size * 4 for b in b_p))
    max_feat = max([w.shape[0] for w in w_p] + [w.shape[1] for w in w_p])
    tmp_bytes = 3 * row_tile * max_feat * 4                         # live f32 temporaries
    est = act_bytes + out_bytes + w_bytes + tmp_bytes
    vmem_limit = int(min(max(int(est * 1.25) + (4 << 20), 16 << 20),
                         policy["vmem_cap"]))

    # ---- scheduler hint ------------------------------------------------------------
    flops = 2 * n_rows * sum(w.shape[0] * w.shape[1] for w in w_p)
    bytes_accessed = (x_in.size * x_bpe
                      + padded_rows * pad_out_last * o_bpe
                      + sum(w.size * c_bpe for w in w_p)
                      + sum(b.size * 4 for b in b_p))
    cost = pl.CostEstimate(flops=int(flops), transcendentals=0,
                           bytes_accessed=int(bytes_accessed))

    # ---- specs ----------------------------------------------------------------------
    in_specs = [pl.BlockSpec((row_tile, pad_in0), lambda i: (i, 0))]
    # Constant index map -> weights never change across grid steps; keep a single
    # VMEM-resident copy when the installed JAX exposes pipeline_mode.
    wb_kwargs = {"pipeline_mode": pl.Buffered(1)} if _SINGLE_BUFFER_WEIGHTS else {}
    for wp, bp in zip(w_p, b_p):
        in_specs.append(pl.BlockSpec(wp.shape, lambda i: (0, 0), **wb_kwargs))
        in_specs.append(pl.BlockSpec(bp.shape, lambda i: (0, 0), **wb_kwargs))
    out_spec = pl.BlockSpec((row_tile, pad_out_last), lambda i: (i, 0))

    kernel = functools.partial(_mlp_kernel, num_layers, compute_dtype)
    args = [x_in]
    for wp, bp in zip(w_p, b_p):
        args.append(wp)
        args.append(bp)

    out = pl.pallas_call(
        kernel,
        out_shape=jax.ShapeDtypeStruct((padded_rows, pad_out_last), out_dtype),
        grid=grid,
        in_specs=in_specs,
        out_specs=out_spec,
        compiler_params=pltpu.CompilerParams(
            dimension_semantics=("parallel",),
            vmem_limit_bytes=vmem_limit,
        ),
        cost_estimate=cost,
    )(*args)

    if padded_rows == n_rows and pad_out_last == out_dim:
        return out
    # Keep the caller under jit so this slice fuses with the consumer.
    return out[:n_rows, :out_dim]


def mlp_pallas(x, weights, biases, **kwargs):
    """Convenience one-shot wrapper (pads params on every call; prefer
    prepare_mlp_params + mlp_pallas_prepared for repeated use)."""
    compute_dtype = kwargs.get("compute_dtype", jnp.bfloat16)
    w_p, b_p, out_dim = prepare_mlp_params(weights, biases, compute_dtype)
    return mlp_pallas_prepared(x, w_p, b_p, out_dim, **kwargs)


def init_mlp_params(key, input_dim, hidden_dim, output_dim, num_layers):
    """Deterministic init matching nn.Linear defaults (uniform +- 1/sqrt(fan_in))."""
    dims_in = [input_dim] + [hidden_dim] * (num_layers - 1)
    dims_out = [hidden_dim] * (num_layers - 1) + [output_dim]
    weights, biases = [], []
    for n_in, n_out in zip(dims_in, dims_out):
        key, kw, kb = jax.random.split(key, 3)
        bound = 1.0 / math.sqrt(n_in)
        # PyTorch stores W as (out, in); we store it transposed (in, out).
        w = jax.random.uniform(kw, (n_in, n_out), jnp.float32, -bound, bound)
        b = jax.random.uniform(kb, (1, n_out), jnp.float32, -bound, bound)
        weights.append(w)
        biases.append(b)
    return weights, biases


def mlp_reference(x, weights, biases, compute_dtype=jnp.float32):
    """Pure-JAX reference mirroring the PyTorch forward (optionally bf16 operands)."""
    num_layers = len(weights)
    h = x.astype(compute_dtype)
    out = None
    for i, (w, b) in enumerate(zip(weights, biases)):
        acc = jnp.dot(h, w.astype(compute_dtype), preferred_element_type=jnp.float32)
        acc = acc + b.reshape(1, -1).astype(jnp.float32)
        if i < num_layers - 1:
            acc = jnp.maximum(acc, 0.0)
            h = acc.astype(compute_dtype)
        else:
            out = acc
    return out


if __name__ == "__main__":
    key = jax.random.PRNGKey(0)

    # --- test 1: small shapes matching the module's bbox-embed usage ---------------
    batch, seq = 2, 8
    input_dim, hidden_dim, output_dim, num_layers = 32, 32, 4, 3

    key, kx = jax.random.split(key)
    x = jax.random.normal(kx, (batch, seq, input_dim), jnp.float32)
    weights, biases = init_mlp_params(key, input_dim, hidden_dim, output_dim, num_layers)

    # Pad/cast the parameters once, outside the per-call path.
    w_p, b_p, out_d = prepare_mlp_params(weights, biases)
    fwd = jax.jit(functools.partial(mlp_pallas_prepared, out_dim=out_d))

    x2d = x.reshape(batch * seq, input_dim)          # Linear acts on the last dim
    out2d = fwd(x2d, w_p, b_p)
    out = out2d.reshape(batch, seq, output_dim)
    jax.block_until_ready(out)

    ref_bf16 = mlp_reference(x2d, weights, biases, jnp.bfloat16).reshape(batch, seq, output_dim)
    ref_f32 = mlp_reference(x2d, weights, biases, jnp.float32).reshape(batch, seq, output_dim)
    assert out.shape == (batch, seq, output_dim)
    assert jnp.allclose(out, ref_bf16, atol=1e-4, rtol=1e-4), "mismatch vs bf16 reference"
    assert jnp.allclose(out, ref_f32, atol=1e-1, rtol=1e-1), "mismatch vs f32 reference"
    # TODO(synk): bf16 MXU operands deviate ~1e-2 rel. from the f32 PyTorch MLP; pass
    # compute_dtype=jnp.float32 to prepare_mlp_params/mlp_pallas_prepared for f32 parity.

    # --- test 2: DETR-like dims + non-divisible row count (exercises padding path) --
    batch2, seq2 = 2, 150                             # 300 rows, not a multiple of 8
    in2, hid2, out_dim2, nl2 = 256, 256, 4, 3
    key, kx2 = jax.random.split(key)
    x2 = jax.random.normal(kx2, (batch2 * seq2, in2), jnp.float32)
    w2, b2 = init_mlp_params(key, in2, hid2, out_dim2, nl2)

    w2_p, b2_p, out_d2 = prepare_mlp_params(w2, b2)
    fwd2 = jax.jit(functools.partial(mlp_pallas_prepared, out_dim=out_d2))
    y2 = fwd2(x2, w2_p, b2_p)
    jax.block_until_ready(y2)
    r2 = mlp_reference(x2, w2, b2, jnp.bfloat16)
    assert y2.shape == (batch2 * seq2, out_dim2)
    assert jnp.allclose(y2, r2, atol=1e-3, rtol=1e-3), "mismatch vs reference (test 2)"

    print("KERNEL_OK")
</pallas_src>

<mosaic_0001>
module attributes {stable_mosaic.version = 11 : i64} {
  func.func @_mlp_kernel(%arg0: i32, %arg1: memref<16x128xbf16, #tpu.memory_space<vmem>>, %arg2: memref<128x128xbf16, #tpu.memory_space<vmem>>, %arg3: memref<1x128xf32, #tpu.memory_space<vmem>>, %arg4: memref<128x128xbf16, #tpu.memory_space<vmem>>, %arg5: memref<1x128xf32, #tpu.memory_space<vmem>>, %arg6: memref<128x128xbf16, #tpu.memory_space<vmem>>, %arg7: memref<1x128xf32, #tpu.memory_space<vmem>>, %arg8: memref<16x128xf32, #tpu.memory_space<vmem>>) attributes {dimension_semantics = [#tpu.dimension_semantics<parallel>], iteration_bounds = array<i64: 1>, scalar_prefetch = 0 : i64, scratch_operands = 0 : i64, tpu.core_type = #tpu.core_type<tc>, window_params = [{transform_indices = @transform_0, window_bounds = array<i64: 16, 128>}, {pipeline_mode = #tpu.pipeline_mode<synchronous>, transform_indices = @transform_1, window_bounds = array<i64: 128, 128>}, {pipeline_mode = #tpu.pipeline_mode<synchronous>, transform_indices = @transform_2, window_bounds = array<i64: 1, 128>}, {pipeline_mode = #tpu.pipeline_mode<synchronous>, transform_indices = @transform_3, window_bounds = array<i64: 128, 128>}, {pipeline_mode = #tpu.pipeline_mode<synchronous>, transform_indices = @transform_4, window_bounds = array<i64: 1, 128>}, {pipeline_mode = #tpu.pipeline_mode<synchronous>, transform_indices = @transform_5, window_bounds = array<i64: 128, 128>}, {pipeline_mode = #tpu.pipeline_mode<synchronous>, transform_indices = @transform_6, window_bounds = array<i64: 1, 128>}, {transform_indices = @transform_7, window_bounds = array<i64: 16, 128>}]} {
    %c0 = arith.constant 0 : index
    %c0_0 = arith.constant 0 : index
    %0 = vector.load %arg1[%c0, %c0_0] : memref<16x128xbf16, #tpu.memory_space<vmem>>, vector<16x128xbf16>
    %c0_1 = arith.constant 0 : index
    %c0_2 = arith.constant 0 : index
    %1 = vector.load %arg2[%c0_1, %c0_2] : memref<128x128xbf16, #tpu.memory_space<vmem>>, vector<128x128xbf16>
    %cst = arith.constant dense<0.000000e+00> : vector<16x128xf32>
    %2 = tpu.matmul %0, %1, %cst {dimension_numbers = #tpu.dot_dimension_numbers<[1], [0], [0], [1], [0, 0, 1, 1], [], []>} : vector<16x128xbf16>, vector<128x128xbf16>, vector<16x128xf32> -> vector<16x128xf32>
    %c0_3 = arith.constant 0 : index
    %c0_4 = arith.constant 0 : index
    %3 = vector.load %arg3[%c0_3, %c0_4] : memref<1x128xf32, #tpu.memory_space<vmem>>, vector<1x128xf32>
    %4 = vector.broadcast %3 : vector<1x128xf32> to vector<16x128xf32>
    %5 = arith.addf %2, %4 : vector<16x128xf32>
    %cst_5 = arith.constant 0.000000e+00 : f32
    %6 = vector.broadcast %cst_5 : f32 to vector<16x128xf32>
    %7 = arith.maximumf %5, %6 : vector<16x128xf32>
    %8 = arith.truncf %7 : vector<16x128xf32> to vector<16x128xbf16>
    %c0_6 = arith.constant 0 : index
    %c0_7 = arith.constant 0 : index
    %9 = vector.load %arg4[%c0_6, %c0_7] : memref<128x128xbf16, #tpu.memory_space<vmem>>, vector<128x128xbf16>
    %cst_8 = arith.constant dense<0.000000e+00> : vector<16x128xf32>
    %10 = tpu.matmul %8, %9, %cst_8 {dimension_numbers = #tpu.dot_dimension_numbers<[1], [0], [0], [1], [0, 0, 1, 1], [], []>} : vector<16x128xbf16>, vector<128x128xbf16>, vector<16x128xf32> -> vector<16x128xf32>
    %c0_9 = arith.constant 0 : index
    %c0_10 = arith.constant 0 : index
    %11 = vector.load %arg5[%c0_9, %c0_10] : memref<1x128xf32, #tpu.memory_space<vmem>>, vector<1x128xf32>
    %12 = vector.broadcast %11 : vector<1x128xf32> to vector<16x128xf32>
    %13 = arith.addf %10, %12 : vector<16x128xf32>
    %cst_11 = arith.constant 0.000000e+00 : f32
    %14 = vector.broadcast %cst_11 : f32 to vector<16x128xf32>
    %15 = arith.maximumf %13, %14 : vector<16x128xf32>
    %16 = arith.truncf %15 : vector<16x128xf32> to vector<16x128xbf16>
    %c0_12 = arith.constant 0 : index
    %c0_13 = arith.constant 0 : index
    %17 = vector.load %arg6[%c0_12, %c0_13] : memref<128x128xbf16, #tpu.memory_space<vmem>>, vector<128x128xbf16>
    %cst_14 = arith.constant dense<0.000000e+00> : vector<16x128xf32>
    %18 = tpu.matmul %16, %17, %cst_14 {dimension_numbers = #tpu.dot_dimension_numbers<[1], [0], [0], [1], [0, 0, 1, 1], [], []>} : vector<16x128xbf16>, vector<128x128xbf16>, vector<16x128xf32> -> vector<16x128xf32>
    %c0_15 = arith.constant 0 : index
    %c0_16 = arith.constant 0 : index
    %19 = vector.load %arg7[%c0_15, %c0_16] : memref<1x128xf32, #tpu.memory_space<vmem>>, vector<1x128xf32>
    %20 = vector.broadcast %19 : vector<1x128xf32> to vector<16x128xf32>
    %21 = arith.addf %18, %20 : vector<16x128xf32>
    %c0_17 = arith.constant 0 : index
    %c0_18 = arith.constant 0 : index
    %22 = vector.load %arg8[%c0_17, %c0_18] : memref<16x128xf32, #tpu.memory_space<vmem>>, vector<16x128xf32>
    tpu.vector_store %arg8[%c0_17, %c0_18], %21 {strides = array<i32>} : memref<16x128xf32, #tpu.memory_space<vmem>>, vector<16x128xf32>,
    return
  }
  func.func @transform_0(%arg0: i32) -> (i32, i32) {
    %c0_i32 = arith.constant 0 : i32
    %c0_i32_0 = arith.constant 0 : i32
    return %arg0, %c0_i32 : i32, i32
  }
  func.func @transform_1(%arg0: i32) -> (i32, i32) {
    %c0_i32 = arith.constant 0 : i32
    %c0_i32_0 = arith.constant 0 : i32
    %c0_i32_1 = arith.constant 0 : i32
    return %c0_i32, %c0_i32_0 : i32, i32
  }
  func.func @transform_2(%arg0: i32) -> (i32, i32) {
    %c0_i32 = arith.constant 0 : i32
    %c0_i32_0 = arith.constant 0 : i32
    %c0_i32_1 = arith.constant 0 : i32
    return %c0_i32, %c0_i32_0 : i32, i32
  }
  func.func @transform_3(%arg0: i32) -> (i32, i32) {
    %c0_i32 = arith.constant 0 : i32
    %c0_i32_0 = arith.constant 0 : i32
    %c0_i32_1 = arith.constant 0 : i32
    return %c0_i32, %c0_i32_0 : i32, i32
  }
  func.func @transform_4(%arg0: i32) -> (i32, i32) {
    %c0_i32 = arith.constant 0 : i32
    %c0_i32_0 = arith.constant 0 : i32
    %c0_i32_1 = arith.constant 0 : i32
    return %c0_i32, %c0_i32_0 : i32, i32
  }
  func.func @transform_5(%arg0: i32) -> (i32, i32) {
    %c0_i32 = arith.constant 0 : i32
    %c0_i32_0 = arith.constant 0 : i32
    %c0_i32_1 = arith.constant 0 : i32
    return %c0_i32, %c0_i32_0 : i32, i32
  }
  func.func @transform_6(%arg0: i32) -> (i32, i32) {
    %c0_i32 = arith.constant 0 : i32
    %c0_i32_0 = arith.constant 0 : i32
    %c0_i32_1 = arith.constant 0 : i32
    return %c0_i32, %c0_i32_0 : i32, i32
  }
  func.func @transform_7(%arg0: i32) -> (i32, i32) {
    %c0_i32 = arith.constant 0 : i32
    %c0_i32_0 = arith.constant 0 : i32
    return %arg0, %c0_i32 : i32, i32
  }
}

</mosaic_0001>

<llo_original>
// kernel: mlp_pallas_prepared.1
$region0: #{mlp_pallas_prepared.1}
  #allocation0 [shape = 'u32[]', space=smem, size = 0x4, offset = 0x4, fixed_abs, tag = 'smem constant byte address 0x4 - core index']
  #allocation1 [shape = 'u32[144,128]{1,0:T(1,128)}', space=vmem, size = 0x12000, scoped, tag = 'internal scratch']
  %s0 = inlined_call_operand.vmem [shape: bf16[16,128], index: 0, kind: input, shape index: {}]
  %s1 = inlined_call_operand.hbm [shape: bf16[128,128], index: 1, kind: input, shape index: {}]
  %s2 = inlined_call_operand.vmem [shape: f32[1,128], index: 2, kind: input, shape index: {}]
  %s3 = inlined_call_operand.hbm [shape: bf16[128,128], index: 3, kind: input, shape index: {}]
  %s4 = inlined_call_operand.vmem [shape: f32[1,128], index: 4, kind: input, shape index: {}]
  %s5 = inlined_call_operand.hbm [shape: bf16[128,128], index: 5, kind: input, shape index: {}]
  %s6 = inlined_call_operand.vmem [shape: f32[1,128], index: 6, kind: input, shape index: {}]
  %s7 = inlined_call_operand.vmem [shape: f32[16,128], index: 7, kind: output, shape index: {}]
  %s8 = sld [smem:[#allocation0]]
  $region50: #{mlp_pallas_prepared.1} parent=0
    _
  %s10 = ssub.s32 1, %s8
  %s11 = scalar_select 0, %s10, %s8
  $region1: #{mlp_pallas_prepared.1} parent=0
    #allocation2 [shape = 'u8[32768]{0}', space=vmem, size = 0x8000, scoped, tag = 'input window, operand 1, single buffered']
    #allocation3 [shape = 's32[1]{0}', space=sflag, size = 0x4, scoped, tag = 'scoped memory for mlp_pallas_prepared.1']
    #allocation4 [shape = 'u8[32768]{0}', space=vmem, size = 0x8000, scoped, tag = 'input window, operand 3, single buffered']
    #allocation5 [shape = 's32[1]{0}', space=sflag, size = 0x4, scoped, tag = 'scoped memory for mlp_pallas_prepared.1']
    #allocation6 [shape = 'u8[32768]{0}', space=vmem, size = 0x8000, scoped, tag = 'input window, operand 5, single buffered']
    %12 = vsyncpa [#allocation3], 0
    %13 = vsyncpa [#allocation5], 0
    // Predicated region
    $region2: #{mlp_pallas_prepared.1} parent=1 // pred_check
      _
    $region3: #{mlp_pallas_prepared.1} parent=1 // pred_check_branch
      %15 = sbr.rel (0) target = $region5
    $region4: #{mlp_pallas_prepared.1} parent=1 // pred_region
      _
    $region5: #{mlp_pallas_prepared.1} parent=1 // pred_fallthru
      _
    // Predicated region
    $region6: #{mlp_pallas_prepared.1} parent=1 // pred_check
      _
    $region7: #{mlp_pallas_prepared.1} parent=1 // pred_check_branch
      %17 = sbr.rel (0) target = $region9
    $region8: #{mlp_pallas_prepared.1} parent=1 // pred_region
      %s19 = ssub.s32 1024, 1024
      %20 = vsyncadd [#allocation3], %s19
      %s21 = sshll.u32 [#allocation2], 4
      %s22 = int_to_ptr.vmem [resolvable:$true] %s21
      %27 = dma.hbm_to_vmem [thread:$0]  %s1, 1024, %s22, [#allocation3], 64, 64, 4
    $region9: #{mlp_pallas_prepared.1} parent=1 // pred_fallthru
      _
    // Predicated region
    $region10: #{mlp_pallas_prepared.1} parent=1 // pred_check
      _
    $region11: #{mlp_pallas_prepared.1} parent=1 // pred_check_branch
      %29 = sbr.rel (0) target = $region13
    $region12: #{mlp_pallas_prepared.1} parent=1 // pred_region
      _
    $region13: #{mlp_pallas_prepared.1} parent=1 // pred_fallthru
      _
    // Predicated region
    $region14: #{mlp_pallas_prepared.1} parent=1 // pred_check
      _
    $region15: #{mlp_pallas_prepared.1} parent=1 // pred_check_branch
      %31 = sbr.rel (0) target = $region17
    $region16: #{mlp_pallas_prepared.1} parent=1 // pred_region
      %s33 = ssub.s32 1024, 1024
      %34 = vsyncadd [#allocation5], %s33
      %s35 = sshll.u32 [#allocation4], 4
      %s36 = int_to_ptr.vmem [resolvable:$true] %s35
      %41 = dma.hbm_to_vmem [thread:$0]  %s3, 1024, %s36, [#allocation5], 64, 64, 4
    $region17: #{mlp_pallas_prepared.1} parent=1 // pred_fallthru
      _
    // Predicated region
    $region18: #{mlp_pallas_prepared.1} parent=1 // pred_check
      _
    $region19: #{mlp_pallas_prepared.1} parent=1 // pred_check_branch
      %43 = sbr.rel (0) target = $region21
    $region20: #{mlp_pallas_prepared.1} parent=1 // pred_region
      _
    $region21: #{mlp_pallas_prepared.1} parent=1 // pred_fallthru
      _
    // Predicated region
    $region22: #{mlp_pallas_prepared.1} parent=1 // pred_check
      _
    $region23: #{mlp_pallas_prepared.1} parent=1 // pred_check_branch
      %45 = sbr.rel (0) target = $region25
    $region24: #{mlp_pallas_prepared.1} parent=1 // pred_region
      %s47 = ssub.s32 1024, 1024
      %48 = vsyncadd [#allocation5], %s47
      %s49 = sshll.u32 [#allocation6], 4
      %s50 = int_to_ptr.vmem [resolvable:$true] %s49
      %55 = dma.hbm_to_vmem [thread:$0]  %s5, 1024, %s50, [#allocation5], 64, 64, 4
    $region25: #{mlp_pallas_prepared.1} parent=1 // pred_fallthru
      _
    // Predicated region
    $region26: #{mlp_pallas_prepared.1} parent=1 // pred_check
      _
    $region27: #{mlp_pallas_prepared.1} parent=1 // pred_check_branch
      %57 = sbr.rel (0) target = $region29
    $region28: #{mlp_pallas_prepared.1} parent=1 // pred_region
      _
    $region29: #{mlp_pallas_prepared.1} parent=1 // pred_fallthru
      _
    // Predicated region
    $region30: #{mlp_pallas_prepared.1} parent=1 // pred_check
      _
    $region31: #{mlp_pallas_prepared.1} parent=1 // pred_check_branch
      %59 = sbr.rel (0) target = $region33
    $region32: #{mlp_pallas_prepared.1} parent=1 // pred_region
      %60 = dma.done [#allocation3], 1024
    $region33: #{mlp_pallas_prepared.1} parent=1 // pred_fallthru
      _
    // Predicated region
    $region34: #{mlp_pallas_prepared.1} parent=1 // pred_check
      _
    $region35: #{mlp_pallas_prepared.1} parent=1 // pred_check_branch
      %62 = sbr.rel (0) target = $region37
    $region36: #{mlp_pallas_prepared.1} parent=1 // pred_region
      %63 = dma.done [#allocation5], 1024
    $region37: #{mlp_pallas_prepared.1} parent=1 // pred_fallthru
      _
    // Predicated region
    $region38: #{mlp_pallas_prepared.1} parent=1 // pred_check
      _
    $region39: #{mlp_pallas_prepared.1} parent=1 // pred_check_branch
      %65 = sbr.rel (0) target = $region41
    $region40: #{mlp_pallas_prepared.1} parent=1 // pred_region
      %66 = dma.done [#allocation5], 1024
    $region41: #{mlp_pallas_prepared.1} parent=1 // pred_fallthru
      _
    %v68 = vld [vmem:[%s0] sm:$0xf]
    %v69 = vld [vmem:[%s0 + $0x4] sm:$0xf]
    %v70 = vld [vmem:[#allocation2] sm:$0xf]
    %v71 = vld [vmem:[#allocation2 + $0x4] sm:$0xf]
    %v72 = vld [vmem:[#allocation2 + $0x8] sm:$0xf]
    %v73 = vld [vmem:[#allocation2 + $0xc] sm:$0xf]
    %v74 = vld [vmem:[#allocation2 + $0x10] sm:$0xf]
    %v75 = vld [vmem:[#allocation2 + $0x14] sm:$0xf]
    %v76 = vld [vmem:[#allocation2 + $0x18] sm:$0xf]
    %v77 = vld [vmem:[#allocation2 + $0x1c] sm:$0xf]
    %v78 = vld [vmem:[#allocation2 + $0x20] sm:$0xf]
    %v79 = vld [vmem:[#allocation2 + $0x24] sm:$0xf]
    %v80 = vld [vmem:[#allocation2 + $0x28] sm:$0xf]
    %v81 = vld [vmem:[#allocation2 + $0x2c] sm:$0xf]
    %v82 = vld [vmem:[#allocation2 + $0x30] sm:$0xf]
    %v83 = vld [vmem:[#allocation2 + $0x34] sm:$0xf]
    %v84 = vld [vmem:[#allocation2 + $0x38] sm:$0xf]
    %v85 = vld [vmem:[#allocation2 + $0x3c] sm:$0xf]
    %v86 = vld [vmem:[%s2] sm:$0x1]
    %v88 = vlaneseq
    %v89 = vshrl.u32 %v88, 7
    %v90 = vsub.s32 0, %v89
    %v91 = vrot.slane %v86, %v90
    %v95 = vunpack.c.l.b16 %v68
    %v96 = vunpack.c.l.b16 %v69
    %v97 = vpack.c.b16 %v96, %v95
    %v115 = vunpack.c.l.b16 %v70
    %v116 = vunpack.c.l.b16 %v71
    %v117 = vunpack.c.l.b16 %v72
    %v118 = vunpack.c.l.b16 %v73
    %v119 = vunpack.c.l.b16 %v74
    %v120 = vunpack.c.l.b16 %v75
    %v121 = vunpack.c.l.b16 %v76
    %v122 = vunpack.c.l.b16 %v77
    %v123 = vunpack.c.l.b16 %v78
    %v124 = vunpack.c.l.b16 %v79
    %v125 = vunpack.c.l.b16 %v80
    %v126 = vunpack.c.l.b16 %v81
    %v127 = vunpack.c.l.b16 %v82
    %v128 = vunpack.c.l.b16 %v83
    %v129 = vunpack.c.l.b16 %v84
    %v130 = vunpack.c.l.b16 %v85
    %v131 = vpack.c.b16 %v116, %v115
    %v132 = vpack.c.b16 %v118, %v117
    %v133 = vpack.c.b16 %v120, %v119
    %v134 = vpack.c.b16 %v122, %v121
    %v135 = vpack.c.b16 %v124, %v123
    %v136 = vpack.c.b16 %v126, %v125
    %v137 = vpack.c.b16 %v128, %v127
    %v138 = vpack.c.b16 %v130, %v129
    %147 = vmatprep.subr.bf16.mxu0 0
    %148 = vmatpush1.bf16.msra.mxu0 %v138
    %149 = vmatprep.subr.bf16.mxu0 0
    %150 = vmatpush1.bf16.msra.mxu0 %v137
    %151 = vmatprep.subr.bf16.mxu0 0
    %152 = vmatpush1.bf16.msra.mxu0 %v136
    %153 = vmatprep.subr.bf16.mxu0 0
    %154 = vmatpush1.bf16.msra.mxu0 %v135
    %155 = vmatprep.subr.bf16.mxu0 0
    %156 = vmatpush1.bf16.msra.mxu0 %v134
    %157 = vmatprep.subr.bf16.mxu0 0
    %158 = vmatpush1.bf16.msra.mxu0 %v133
    %159 = vmatprep.subr.bf16.mxu0 0
    %160 = vmatpush1.bf16.msra.mxu0 %v132
    %161 = vmatprep.subr.bf16.mxu0 0
    %162 = vmatpush1.bf16.msra.mxu0 %v131
    %163 = vmatprep.subr.bf16.mxu0 0
    %164 = vmatpush2.bf16.msra.mxu0 0
    %165 = vmatprep.subr.bf16.mxu0 0
    %166 = vmatpush2.bf16.msra.mxu0 0
    %167 = vmatprep.subr.bf16.mxu0 0
    %168 = vmatpush2.bf16.msra.mxu0 0
    %169 = vmatprep.subr.bf16.mxu0 0
    %170 = vmatpush2.bf16.msra.mxu0 0
    %171 = vmatprep.subr.bf16.mxu0 0
    %172 = vmatpush2.bf16.msra.mxu0 0
    %173 = vmatprep.subr.bf16.mxu0 0
    %174 = vmatpush2.bf16.msra.mxu0 0
    %175 = vmatprep.subr.bf16.mxu0 0
    %176 = vmatpush2.bf16.msra.mxu0 0
    %177 = vmatprep.subr.bf16.mxu0 0
    %178 = vmatpush2.bf16.msra.mxu0 0
    %179 = vmatprep.mubr.bf16.mxu0 0
    %180 = vmatmul.mubr.bf16.gmra.mxu0 %v97
    %v181 = vpop.f32.mrf.mxu0
    %v182 = vadd.f32 %v91, %v181
    %v183 = vpop.f32.mrf.mxu0
    %v184 = vpop.f32.mrf.mxu0
    %v185 = vadd.f32 %v91, %v184
    %v186 = vpop.f32.mrf.mxu0
    %187 = vdwg.mxu0
    %v188 = vmax.f32 %v182, 0.0
    %v189 = vmax.f32 %v185, 0.0
    %v190 = vpack.c.bf16 %v189, %v188
    %v191 = vld [vmem:[#allocation4] sm:$0xf]
    %v192 = vld [vmem:[#allocation4 + $0x4] sm:$0xf]
    %v193 = vld [vmem:[#allocation4 + $0x8] sm:$0xf]
    %v194 = vld [vmem:[#allocation4 + $0xc] sm:$0xf]
    %v195 = vld [vmem:[#allocation4 + $0x10] sm:$0xf]
    %v196 = vld [vmem:[#allocation4 + $0x14] sm:$0xf]
    %v197 = vld [vmem:[#allocation4 + $0x18] sm:$0xf]
    %v198 = vld [vmem:[#allocation4 + $0x1c] sm:$0xf]
    %v199 = vld [vmem:[#allocation4 + $0x20] sm:$0xf]
    %v200 = vld [vmem:[#allocation4 + $0x24] sm:$0xf]
    %v201 = vld [vmem:[#allocation4 + $0x28] sm:$0xf]
    %v202 = vld [vmem:[#allocation4 + $0x2c] sm:$0xf]
    %v203 = vld [vmem:[#allocation4 + $0x30] sm:$0xf]
    %v204 = vld [vmem:[#allocation4 + $0x34] sm:$0xf]
    %v205 = vld [vmem:[#allocation4 + $0x38] sm:$0xf]
    %v206 = vld [vmem:[#allocation4 + $0x3c] sm:$0xf]
    %v207 = vld [vmem:[%s4] sm:$0x1]
    %v209 = vlaneseq
    %v210 = vshrl.u32 %v209, 7
    %v211 = vsub.s32 0, %v210
    %v212 = vrot.slane %v207, %v211
    %v230 = vunpack.c.l.b16 %v191
    %v231 = vunpack.c.l.b16 %v192
    %v232 = vunpack.c.l.b16 %v193
    %v233 = vunpack.c.l.b16 %v194
    %v234 = vunpack.c.l.b16 %v195
    %v235 = vunpack.c.l.b16 %v196
    %v236 = vunpack.c.l.b16 %v197
    %v237 = vunpack.c.l.b16 %v198
    %v238 = vunpack.c.l.b16 %v199
    %v239 = vunpack.c.l.b16 %v200
    %v240 = vunpack.c.l.b16 %v201
    %v241 = vunpack.c.l.b16 %v202
    %v242 = vunpack.c.l.b16 %v203
    %v243 = vunpack.c.l.b16 %v204
    %v244 = vunpack.c.l.b16 %v205
    %v245 = vunpack.c.l.b16 %v206
    %v246 = vpack.c.b16 %v231, %v230
    %v247 = vpack.c.b16 %v233, %v232
    %v248 = vpack.c.b16 %v235, %v234
    %v249 = vpack.c.b16 %v237, %v236
    %v250 = vpack.c.b16 %v239, %v238
    %v251 = vpack.c.b16 %v241, %v240
    %v252 = vpack.c.b16 %v243, %v242
    %v253 = vpack.c.b16 %v245, %v244
    %262 = vmatprep.subr.bf16.mxu0 0
    %263 = vmatpush1.bf16.msra.mxu0 %v253
    %264 = vmatprep.subr.bf16.mxu0 0
    %265 = vmatpush1.bf16.msra.mxu0 %v252
    %266 = vmatprep.subr.bf16.mxu0 0
    %267 = vmatpush1.bf16.msra.mxu0 %v251
    %268 = vmatprep.subr.bf16.mxu0 0
    %269 = vmatpush1.bf16.msra.mxu0 %v250
    %270 = vmatprep.subr.bf16.mxu0 0
    %271 = vmatpush1.bf16.msra.mxu0 %v249
    %272 = vmatprep.subr.bf16.mxu0 0
    %273 = vmatpush1.bf16.msra.mxu0 %v248
    %274 = vmatprep.subr.bf16.mxu0 0
    %275 = vmatpush1.bf16.msra.mxu0 %v247
    %276 = vmatprep.subr.bf16.mxu0 0
    %277 = vmatpush1.bf16.msra.mxu0 %v246
    %278 = vmatprep.subr.bf16.mxu0 0
    %279 = vmatpush2.bf16.msra.mxu0 0
    %280 = vmatprep.subr.bf16.mxu0 0
    %281 = vmatpush2.bf16.msra.mxu0 0
    %282 = vmatprep.subr.bf16.mxu0 0
    %283 = vmatpush2.bf16.msra.mxu0 0
    %284 = vmatprep.subr.bf16.mxu0 0
    %285 = vmatpush2.bf16.msra.mxu0 0
    %286 = vmatprep.subr.bf16.mxu0 0
    %287 = vmatpush2.bf16.msra.mxu0 0
    %288 = vmatprep.subr.bf16.mxu0 0
    %289 = vmatpush2.bf16.msra.mxu0 0
    %290 = vmatprep.subr.bf16.mxu0 0
    %291 = vmatpush2.bf16.msra.mxu0 0
    %292 = vmatprep.subr.bf16.mxu0 0
    %293 = vmatpush2.bf16.msra.mxu0 0
    %294 = vmatprep.mubr.bf16.mxu0 0
    %295 = vmatmul.mubr.bf16.gmra.mxu0 %v190
    %v296 = vpop.f32.mrf.mxu0
    %v297 = vadd.f32 %v212, %v296
    %v298 = vpop.f32.mrf.mxu0
    %v299 = vpop.f32.mrf.mxu0
    %v300 = vadd.f32 %v212, %v299
    %v301 = vpop.f32.mrf.mxu0
    %302 = vdwg.mxu0
    %v303 = vmax.f32 %v297, 0.0
    %v304 = vmax.f32 %v300, 0.0
    %v305 = vpack.c.bf16 %v304, %v303
    %v306 = vld [vmem:[#allocation6] sm:$0xf]
    %v307 = vld [vmem:[#allocation6 + $0x4] sm:$0xf]
    %v308 = vld [vmem:[#allocation6 + $0x8] sm:$0xf]
    %v309 = vld [vmem:[#allocation6 + $0xc] sm:$0xf]
    %v310 = vld [vmem:[#allocation6 + $0x10] sm:$0xf]
    %v311 = vld [vmem:[#allocation6 + $0x14] sm:$0xf]
    %v312 = vld [vmem:[#allocation6 + $0x18] sm:$0xf]
    %v313 = vld [vmem:[#allocation6 + $0x1c] sm:$0xf]
    %v314 = vld [vmem:[#allocation6 + $0x20] sm:$0xf]
    %v315 = vld [vmem:[#allocation6 + $0x24] sm:$0xf]
    %v316 = vld [vmem:[#allocation6 + $0x28] sm:$0xf]
    %v317 = vld [vmem:[#allocation6 + $0x2c] sm:$0xf]
    %v318 = vld [vmem:[#allocation6 + $0x30] sm:$0xf]
    %v319 = vld [vmem:[#allocation6 + $0x34] sm:$0xf]
    %v320 = vld [vmem:[#allocation6 + $0x38] sm:$0xf]
    %v321 = vld [vmem:[#allocation6 + $0x3c] sm:$0xf]
    %v322 = vld [vmem:[%s6] sm:$0x1]
    %v324 = vlaneseq
    %v325 = vshrl.u32 %v324, 7
    %v326 = vsub.s32 0, %v325
    %v327 = vrot.slane %v322, %v326
    %v345 = vunpack.c.l.b16 %v306
    %v346 = vunpack.c.l.b16 %v307
    %v347 = vunpack.c.l.b16 %v308
    %v348 = vunpack.c.l.b16 %v309
    %v349 = vunpack.c.l.b16 %v310
    %v350 = vunpack.c.l.b16 %v311
    %v351 = vunpack.c.l.b16 %v312
    %v352 = vunpack.c.l.b16 %v313
    %v353 = vunpack.c.l.b16 %v314
    %v354 = vunpack.c.l.b16 %v315
    %v355 = vunpack.c.l.b16 %v316
    %v356 = vunpack.c.l.b16 %v317
    %v357 = vunpack.c.l.b16 %v318
    %v358 = vunpack.c.l.b16 %v319
    %v359 = vunpack.c.l.b16 %v320
    %v360 = vunpack.c.l.b16 %v321
    %v361 = vpack.c.b16 %v346, %v345
    %v362 = vpack.c.b16 %v348, %v347
    %v363 = vpack.c.b16 %v350, %v349
    %v364 = vpack.c.b16 %v352, %v351
    %v365 = vpack.c.b16 %v354, %v353
    %v366 = vpack.c.b16 %v356, %v355
    %v367 = vpack.c.b16 %v358, %v357
    %v368 = vpack.c.b16 %v360, %v359
    %377 = vmatprep.subr.bf16.mxu0 0
    %378 = vmatpush1.bf16.msra.mxu0 %v368
    %379 = vmatprep.subr.bf16.mxu0 0
    %380 = vmatpush1.bf16.msra.mxu0 %v367
    %381 = vmatprep.subr.bf16.mxu0 0
    %382 = vmatpush1.bf16.msra.mxu0 %v366
    %383 = vmatprep.subr.bf16.mxu0 0
    %384 = vmatpush1.bf16.msra.mxu0 %v365
    %385 = vmatprep.subr.bf16.mxu0 0
    %386 = vmatpush1.bf16.msra.mxu0 %v364
    %387 = vmatprep.subr.bf16.mxu0 0
    %388 = vmatpush1.bf16.msra.mxu0 %v363
    %389 = vmatprep.subr.bf16.mxu0 0
    %390 = vmatpush1.bf16.msra.mxu0 %v362
    %391 = vmatprep.subr.bf16.mxu0 0
    %392 = vmatpush1.bf16.msra.mxu0 %v361
    %393 = vmatprep.subr.bf16.mxu0 0
    %394 = vmatpush2.bf16.msra.mxu0 0
    %395 = vmatprep.subr.bf16.mxu0 0
    %396 = vmatpush2.bf16.msra.mxu0 0
    %397 = vmatprep.subr.bf16.mxu0 0
    %398 = vmatpush2.bf16.msra.mxu0 0
    %399 = vmatprep.subr.bf16.mxu0 0
    %400 = vmatpush2.bf16.msra.mxu0 0
    %401 = vmatprep.subr.bf16.mxu0 0
    %402 = vmatpush2.bf16.msra.mxu0 0
    %403 = vmatprep.subr.bf16.mxu0 0
    %404 = vmatpush2.bf16.msra.mxu0 0
    %405 = vmatprep.subr.bf16.mxu0 0
    %406 = vmatpush2.bf16.msra.mxu0 0
    %407 = vmatprep.subr.bf16.mxu0 0
    %408 = vmatpush2.bf16.msra.mxu0 0
    %409 = vmatprep.mubr.bf16.mxu0 0
    %410 = vmatmul.mubr.bf16.gmra.mxu0 %v305
    %v411 = vpop.f32.mrf.mxu0
    %v412 = vadd.f32 %v327, %v411
    %v413 = vpop.f32.mrf.mxu0
    %v414 = vpop.f32.mrf.mxu0
    %v415 = vadd.f32 %v327, %v414
    %v416 = vpop.f32.mrf.mxu0
    %417 = vdwg.mxu0
    %418 = vst [vmem:[%s7] sm:$0xff] %v412
    %419 = vst [vmem:[%s7 + $0x8] sm:$0xff] %v415
    // Predicated region
    $region42: #{mlp_pallas_prepared.1} parent=1 // pred_check
      _
    $region43: #{mlp_pallas_prepared.1} parent=1 // pred_check_branch
      %421 = sbr.rel (0) target = $region45
    $region44: #{mlp_pallas_prepared.1} parent=1 // pred_region
      _
    $region45: #{mlp_pallas_prepared.1} parent=1 // pred_fallthru
      _
    // Predicated region
    $region46: #{mlp_pallas_prepared.1} parent=1 // pred_check
      _
    $region47: #{mlp_pallas_prepared.1} parent=1 // pred_check_branch
      %423 = sbr.rel (0) target = $region49
    $region48: #{mlp_pallas_prepared.1} parent=1 // pred_region
      _
    $region49: #{mlp_pallas_prepared.1} parent=1 // pred_fallthru
      _
    %424 = vsyncpa [#allocation3], 1
    %425 = vsyncpa [#allocation5], 1

</llo_original>
